<compile_context>
chip_gen: v5e
topology: v5e:2x2
jax: 0.10.0
libtpu: 0.0.40
codegen_flags: <defaults>
</compile_context>

<pallas_src>
import jax
import jax.numpy as jnp
from jax.experimental import pallas as pl
from jax.experimental.pallas import tpu as pltpu


def _pick_batch_block(B: int) -> int:
    """Batch rows per grid step: multiple of 8, VMEM-budgeted, >=2 steps when possible."""
    if B <= 8:
        return B                            # single full-extent block
    cap = 1024                              # flat blocks ~3 KiB/elem double-buffered -> ~3 MiB
    bb = min(cap, pl.cdiv(B, 8) * 8)
    if pl.cdiv(B, bb) < 2:                  # keep >=2 parallel steps for v7x megacore
        bb = pl.cdiv(pl.cdiv(B, 2), 8) * 8
    return bb


def _make_kernel(N: int, F: int):
    """Kernel closure over the (small, static) node count N and feature dim F."""

    def kernel(x_ref, adj_ref, wh1_ref, b1_ref, w2_ref, b2_ref, out_ref):
        x = x_ref[...]       # (BB, N*F)   x[:, j*F + f]  == x[b, j, f]
        adj = adj_ref[...]   # (BB, N*N)   adj[:, i*N + j] == adj[b, i, j]

        # Static unrolled lane-slice views of the dense blocks (N is small).
        adj_rows = [adj[:, i * N:(i + 1) * N] for i in range(N)]   # adj[:, i, :] -> (BB, N)
        x_nodes = [x[:, j * F:(j + 1) * F] for j in range(N)]      # x[:, j, :]   -> (BB, F)

        # c = 1^T adj  (column sums over nodes)                      (BB, N)
        c = adj_rows[0]
        for i in range(1, N):
            c = c + adj_rows[i]

        # p0 = 1^T x                                                 (BB, F)
        p0 = x_nodes[0]
        for j in range(1, N):
            p0 = p0 + x_nodes[j]

        # c2 = c @ adj  and  p1 = c @ x  (row-vector products, pure VPU)
        c2 = c[:, 0:1] * adj_rows[0]
        p1 = c[:, 0:1] * x_nodes[0]
        for k in range(1, N):
            ck = c[:, k:k + 1]
            c2 = c2 + ck * adj_rows[k]
            p1 = p1 + ck * x_nodes[k]

        # p2 = (c @ adj) @ x                                         (BB, F)
        p2 = c2[:, 0:1] * x_nodes[0]
        for k in range(1, N):
            p2 = p2 + c2[:, k:k + 1] * x_nodes[k]

        # z1 = LeakyReLU_{0.05}( [p2, p1, p0] @ wh1 + b1 )   == l1(sum_n h2[n])
        p_cat = jnp.concatenate([p2, p1, p0], axis=-1)               # (BB, 3F)
        z1 = jnp.dot(p_cat, wh1_ref[...],
                     preferred_element_type=jnp.float32) + b1_ref[...]
        z1 = jnp.where(z1 > 0, z1, 0.05 * z1)

        # out = z1 @ W2 + b2                                         == l2
        out = jnp.dot(z1, w2_ref[...],
                      preferred_element_type=jnp.float32) + b2_ref[...]
        out_ref[...] = out.astype(out_ref.dtype)                     # lane-dense store

    return kernel


@jax.jit
def network_encoder_forward(x, adj, params):
    """x: (B, N, F) f32, adj: (B, N, N) f32 -> (B, HL) f32."""
    B, N, F = x.shape
    wn1, ws1 = params["wn1"], params["ws1"]          # (F, H1)
    wn2, ws2 = params["wn2"], params["ws2"]          # (H1, H2)
    w1, b1 = params["w1"], params["b1"]              # (H2, HL), (HL,)
    w2, b2 = params["w2"], params["b2"]              # (HL, HL), (HL,)
    HL = w1.shape[1]
    HLp = pl.cdiv(HL, 128) * 128

    # Composite graph weights (exact by per-node linearity of both GraphConvs):
    #   s = sum_n h2[n] = p2 @ (Wn1 Wn2) + p1 @ (Ws1 Wn2 + Wn1 Ws2) + p0 @ (Ws1 Ws2)
    wg = jnp.concatenate(
        [wn1 @ wn2, ws1 @ wn2 + wn1 @ ws2, ws1 @ ws2], axis=0)       # (3F, H2)

    # Lane-pad the linear head to 128 and fold l1's weight into wg (still exact:
    # padded z1 lanes are zero, LeakyReLU(0)=0, and w2's padded rows are zero;
    # padded output lanes are sliced off below).
    w1p = jnp.pad(w1, ((0, 0), (0, HLp - HL)))                       # (H2, HLp)
    wh1 = wg @ w1p                                                   # (3F, HLp)
    b1p = jnp.pad(b1.reshape(1, HL), ((0, 0), (0, HLp - HL)))        # (1, HLp)
    w2p = jnp.pad(w2, ((0, HLp - HL), (0, HLp - HL)))                # (HLp, HLp)
    b2p = jnp.pad(b2.reshape(1, HL), ((0, 0), (0, HLp - HL)))        # (1, HLp)

    # Sublane-dense flat layout (free reshape of contiguous trailing dims).
    xf = x.reshape(B, N * F)
    adjf = adj.reshape(B, N * N)

    BB = _pick_batch_block(B)
    F3 = wh1.shape[0]
    kernel = _make_kernel(N, F)

    out = pl.pallas_call(
        kernel,
        out_shape=jax.ShapeDtypeStruct((B, HLp), jnp.float32),
        grid=(pl.cdiv(B, BB),),
        in_specs=[
            pl.BlockSpec((BB, N * F), lambda b: (b, 0)),
            pl.BlockSpec((BB, N * N), lambda b: (b, 0)),
            pl.BlockSpec((F3, HLp), lambda b: (0, 0)),
            pl.BlockSpec((1, HLp), lambda b: (0, 0)),
            pl.BlockSpec((HLp, HLp), lambda b: (0, 0)),
            pl.BlockSpec((1, HLp), lambda b: (0, 0)),
        ],
        out_specs=pl.BlockSpec((BB, HLp), lambda b: (b, 0)),
        compiler_params=pltpu.CompilerParams(
            dimension_semantics=("parallel",),
        ),
    )(xf, adjf, wh1, b1p, w2p, b2p)
    return out[:, :HL]


def init_params(key, in_dim, hidden_dim1=10, hidden_dim2=20, hidden_dim_linear=100):
    """Deterministic synthetic parameter init (module shapes from __init__)."""
    ks = jax.random.split(key, 8)
    f32 = jnp.float32
    return {
        # GraphConv 1
        "wn1": jax.random.normal(ks[0], (in_dim, hidden_dim1), f32) * 0.1,
        "ws1": jax.random.normal(ks[1], (in_dim, hidden_dim1), f32) * 0.1,
        # GraphConv 2
        "wn2": jax.random.normal(ks[2], (hidden_dim1, hidden_dim2), f32) * 0.1,
        "ws2": jax.random.normal(ks[3], (hidden_dim1, hidden_dim2), f32) * 0.1,
        # l1 (stored (in, out)); nn.Linear computes x @ W.T + b
        "w1": jax.random.normal(ks[4], (hidden_dim2, hidden_dim_linear), f32) * 0.1,
        "b1": jax.random.normal(ks[5], (hidden_dim_linear,), f32) * 0.1,
        # l2
        "w2": jax.random.normal(ks[6], (hidden_dim_linear, hidden_dim_linear), f32) * 0.1,
        "b2": jax.random.normal(ks[7], (hidden_dim_linear,), f32) * 0.1,
    }


def reference_forward(x, adj, p):
    """Pure-JAX reference matching the PyTorch forward."""
    h1 = jnp.einsum("bij,bjf->bif", adj, x) @ p["wn1"] + x @ p["ws1"]
    h2 = jnp.einsum("bij,bjf->bif", adj, h1) @ p["wn2"] + h1 @ p["ws2"]
    s = h2.sum(axis=1)
    z = s @ p["w1"] + p["b1"]
    z = jnp.where(z > 0, z, 0.05 * z)
    return z @ p["w2"] + p["b2"]


if __name__ == "__main__":
    # Small shapes consistent with the module; B=13 exercises the ragged-tail
    # path (grid=2 blocks of 8 with 3 masked rows) and the 2-step parallel grid.
    B, N, IN_DIM = 13, 8, 4
    H1, H2, HL = 10, 20, 100

    key = jax.random.PRNGKey(0)
    kx, kadj, kp = jax.random.split(key, 3)

    x = jax.random.normal(kx, (B, N, IN_DIM), jnp.float32)
    a = jax.random.uniform(kadj, (B, N, N), jnp.float32)
    adj = 0.5 * (a + jnp.swapaxes(a, 1, 2))   # symmetric-ish dense adjacency

    params = init_params(kp, IN_DIM, H1, H2, HL)

    out = network_encoder_forward(x, adj, params)
    out = jax.block_until_ready(out)

    ref = reference_forward(x, adj, params)
    assert out.shape == (B, HL), out.shape
    assert jnp.allclose(out, ref, atol=1e-3, rtol=1e-3), "mismatch vs reference"

    print("KERNEL_OK")
</pallas_src>

<mosaic_0001>
module attributes {stable_mosaic.version = 11 : i64} {
  func.func @kernel(%arg0: i32, %arg1: memref<8x32xf32, #tpu.memory_space<vmem>>, %arg2: memref<8x64xf32, #tpu.memory_space<vmem>>, %arg3: memref<12x128xf32, #tpu.memory_space<vmem>>, %arg4: memref<1x128xf32, #tpu.memory_space<vmem>>, %arg5: memref<128x128xf32, #tpu.memory_space<vmem>>, %arg6: memref<1x128xf32, #tpu.memory_space<vmem>>, %arg7: memref<8x128xf32, #tpu.memory_space<vmem>>) attributes {dimension_semantics = [#tpu.dimension_semantics<parallel>], iteration_bounds = array<i64: 2>, scalar_prefetch = 0 : i64, scratch_operands = 0 : i64, tpu.core_type = #tpu.core_type<tc>, window_params = [{transform_indices = @transform_0, window_bounds = array<i64: 8, 32>}, {transform_indices = @transform_1, window_bounds = array<i64: 8, 64>}, {pipeline_mode = #tpu.pipeline_mode<synchronous>, transform_indices = @transform_2, window_bounds = array<i64: 12, 128>}, {pipeline_mode = #tpu.pipeline_mode<synchronous>, transform_indices = @transform_3, window_bounds = array<i64: 1, 128>}, {pipeline_mode = #tpu.pipeline_mode<synchronous>, transform_indices = @transform_4, window_bounds = array<i64: 128, 128>}, {pipeline_mode = #tpu.pipeline_mode<synchronous>, transform_indices = @transform_5, window_bounds = array<i64: 1, 128>}, {transform_indices = @transform_6, window_bounds = array<i64: 8, 128>}]} {
    %c0 = arith.constant 0 : index
    %c0_0 = arith.constant 0 : index
    %0 = vector.load %arg1[%c0, %c0_0] : memref<8x32xf32, #tpu.memory_space<vmem>>, vector<8x32xf32>
    %c0_1 = arith.constant 0 : index
    %c0_2 = arith.constant 0 : index
    %1 = vector.load %arg2[%c0_1, %c0_2] : memref<8x64xf32, #tpu.memory_space<vmem>>, vector<8x64xf32>
    %2 = vector.extract_strided_slice %1 {offsets = [0, 0], sizes = [8, 8], strides = [1, 1]} : vector<8x64xf32> to vector<8x8xf32>
    %3 = vector.extract_strided_slice %1 {offsets = [0, 8], sizes = [8, 8], strides = [1, 1]} : vector<8x64xf32> to vector<8x8xf32>
    %4 = vector.extract_strided_slice %1 {offsets = [0, 16], sizes = [8, 8], strides = [1, 1]} : vector<8x64xf32> to vector<8x8xf32>
    %5 = vector.extract_strided_slice %1 {offsets = [0, 24], sizes = [8, 8], strides = [1, 1]} : vector<8x64xf32> to vector<8x8xf32>
    %6 = vector.extract_strided_slice %1 {offsets = [0, 32], sizes = [8, 8], strides = [1, 1]} : vector<8x64xf32> to vector<8x8xf32>
    %7 = vector.extract_strided_slice %1 {offsets = [0, 40], sizes = [8, 8], strides = [1, 1]} : vector<8x64xf32> to vector<8x8xf32>
    %8 = vector.extract_strided_slice %1 {offsets = [0, 48], sizes = [8, 8], strides = [1, 1]} : vector<8x64xf32> to vector<8x8xf32>
    %9 = vector.extract_strided_slice %1 {offsets = [0, 56], sizes = [8, 8], strides = [1, 1]} : vector<8x64xf32> to vector<8x8xf32>
    %10 = vector.extract_strided_slice %0 {offsets = [0, 0], sizes = [8, 4], strides = [1, 1]} : vector<8x32xf32> to vector<8x4xf32>
    %11 = vector.extract_strided_slice %0 {offsets = [0, 4], sizes = [8, 4], strides = [1, 1]} : vector<8x32xf32> to vector<8x4xf32>
    %12 = vector.extract_strided_slice %0 {offsets = [0, 8], sizes = [8, 4], strides = [1, 1]} : vector<8x32xf32> to vector<8x4xf32>
    %13 = vector.extract_strided_slice %0 {offsets = [0, 12], sizes = [8, 4], strides = [1, 1]} : vector<8x32xf32> to vector<8x4xf32>
    %14 = vector.extract_strided_slice %0 {offsets = [0, 16], sizes = [8, 4], strides = [1, 1]} : vector<8x32xf32> to vector<8x4xf32>
    %15 = vector.extract_strided_slice %0 {offsets = [0, 20], sizes = [8, 4], strides = [1, 1]} : vector<8x32xf32> to vector<8x4xf32>
    %16 = vector.extract_strided_slice %0 {offsets = [0, 24], sizes = [8, 4], strides = [1, 1]} : vector<8x32xf32> to vector<8x4xf32>
    %17 = vector.extract_strided_slice %0 {offsets = [0, 28], sizes = [8, 4], strides = [1, 1]} : vector<8x32xf32> to vector<8x4xf32>
    %18 = arith.addf %2, %3 : vector<8x8xf32>
    %19 = arith.addf %18, %4 : vector<8x8xf32>
    %20 = arith.addf %19, %5 : vector<8x8xf32>
    %21 = arith.addf %20, %6 : vector<8x8xf32>
    %22 = arith.addf %21, %7 : vector<8x8xf32>
    %23 = arith.addf %22, %8 : vector<8x8xf32>
    %24 = arith.addf %23, %9 : vector<8x8xf32>
    %25 = arith.addf %10, %11 : vector<8x4xf32>
    %26 = arith.addf %25, %12 : vector<8x4xf32>
    %27 = arith.addf %26, %13 : vector<8x4xf32>
    %28 = arith.addf %27, %14 : vector<8x4xf32>
    %29 = arith.addf %28, %15 : vector<8x4xf32>
    %30 = arith.addf %29, %16 : vector<8x4xf32>
    %31 = arith.addf %30, %17 : vector<8x4xf32>
    %32 = vector.extract_strided_slice %24 {offsets = [0, 0], sizes = [8, 1], strides = [1, 1]} : vector<8x8xf32> to vector<8x1xf32>
    %33 = vector.broadcast %32 : vector<8x1xf32> to vector<8x8xf32>
    %34 = arith.mulf %33, %2 : vector<8x8xf32>
    %35 = vector.extract_strided_slice %24 {offsets = [0, 0], sizes = [8, 1], strides = [1, 1]} : vector<8x8xf32> to vector<8x1xf32>
    %36 = vector.broadcast %35 : vector<8x1xf32> to vector<8x4xf32>
    %37 = arith.mulf %36, %10 : vector<8x4xf32>
    %38 = vector.extract_strided_slice %24 {offsets = [0, 1], sizes = [8, 1], strides = [1, 1]} : vector<8x8xf32> to vector<8x1xf32>
    %39 = vector.broadcast %38 : vector<8x1xf32> to vector<8x8xf32>
    %40 = arith.mulf %39, %3 : vector<8x8xf32>
    %41 = arith.addf %34, %40 : vector<8x8xf32>
    %42 = vector.broadcast %38 : vector<8x1xf32> to vector<8x4xf32>
    %43 = arith.mulf %42, %11 : vector<8x4xf32>
    %44 = arith.addf %37, %43 : vector<8x4xf32>
    %45 = vector.extract_strided_slice %24 {offsets = [0, 2], sizes = [8, 1], strides = [1, 1]} : vector<8x8xf32> to vector<8x1xf32>
    %46 = vector.broadcast %45 : vector<8x1xf32> to vector<8x8xf32>
    %47 = arith.mulf %46, %4 : vector<8x8xf32>
    %48 = arith.addf %41, %47 : vector<8x8xf32>
    %49 = vector.broadcast %45 : vector<8x1xf32> to vector<8x4xf32>
    %50 = arith.mulf %49, %12 : vector<8x4xf32>
    %51 = arith.addf %44, %50 : vector<8x4xf32>
    %52 = vector.extract_strided_slice %24 {offsets = [0, 3], sizes = [8, 1], strides = [1, 1]} : vector<8x8xf32> to vector<8x1xf32>
    %53 = vector.broadcast %52 : vector<8x1xf32> to vector<8x8xf32>
    %54 = arith.mulf %53, %5 : vector<8x8xf32>
    %55 = arith.addf %48, %54 : vector<8x8xf32>
    %56 = vector.broadcast %52 : vector<8x1xf32> to vector<8x4xf32>
    %57 = arith.mulf %56, %13 : vector<8x4xf32>
    %58 = arith.addf %51, %57 : vector<8x4xf32>
    %59 = vector.extract_strided_slice %24 {offsets = [0, 4], sizes = [8, 1], strides = [1, 1]} : vector<8x8xf32> to vector<8x1xf32>
    %60 = vector.broadcast %59 : vector<8x1xf32> to vector<8x8xf32>
    %61 = arith.mulf %60, %6 : vector<8x8xf32>
    %62 = arith.addf %55, %61 : vector<8x8xf32>
    %63 = vector.broadcast %59 : vector<8x1xf32> to vector<8x4xf32>
    %64 = arith.mulf %63, %14 : vector<8x4xf32>
    %65 = arith.addf %58, %64 : vector<8x4xf32>
    %66 = vector.extract_strided_slice %24 {offsets = [0, 5], sizes = [8, 1], strides = [1, 1]} : vector<8x8xf32> to vector<8x1xf32>
    %67 = vector.broadcast %66 : vector<8x1xf32> to vector<8x8xf32>
    %68 = arith.mulf %67, %7 : vector<8x8xf32>
    %69 = arith.addf %62, %68 : vector<8x8xf32>
    %70 = vector.broadcast %66 : vector<8x1xf32> to vector<8x4xf32>
    %71 = arith.mulf %70, %15 : vector<8x4xf32>
    %72 = arith.addf %65, %71 : vector<8x4xf32>
    %73 = vector.extract_strided_slice %24 {offsets = [0, 6], sizes = [8, 1], strides = [1, 1]} : vector<8x8xf32> to vector<8x1xf32>
    %74 = vector.broadcast %73 : vector<8x1xf32> to vector<8x8xf32>
    %75 = arith.mulf %74, %8 : vector<8x8xf32>
    %76 = arith.addf %69, %75 : vector<8x8xf32>
    %77 = vector.broadcast %73 : vector<8x1xf32> to vector<8x4xf32>
    %78 = arith.mulf %77, %16 : vector<8x4xf32>
    %79 = arith.addf %72, %78 : vector<8x4xf32>
    %80 = vector.extract_strided_slice %24 {offsets = [0, 7], sizes = [8, 1], strides = [1, 1]} : vector<8x8xf32> to vector<8x1xf32>
    %81 = vector.broadcast %80 : vector<8x1xf32> to vector<8x8xf32>
    %82 = arith.mulf %81, %9 : vector<8x8xf32>
    %83 = arith.addf %76, %82 : vector<8x8xf32>
    %84 = vector.broadcast %80 : vector<8x1xf32> to vector<8x4xf32>
    %85 = arith.mulf %84, %17 : vector<8x4xf32>
    %86 = arith.addf %79, %85 : vector<8x4xf32>
    %87 = vector.extract_strided_slice %83 {offsets = [0, 0], sizes = [8, 1], strides = [1, 1]} : vector<8x8xf32> to vector<8x1xf32>
    %88 = vector.broadcast %87 : vector<8x1xf32> to vector<8x4xf32>
    %89 = arith.mulf %88, %10 : vector<8x4xf32>
    %90 = vector.extract_strided_slice %83 {offsets = [0, 1], sizes = [8, 1], strides = [1, 1]} : vector<8x8xf32> to vector<8x1xf32>
    %91 = vector.broadcast %90 : vector<8x1xf32> to vector<8x4xf32>
    %92 = arith.mulf %91, %11 : vector<8x4xf32>
    %93 = arith.addf %89, %92 : vector<8x4xf32>
    %94 = vector.extract_strided_slice %83 {offsets = [0, 2], sizes = [8, 1], strides = [1, 1]} : vector<8x8xf32> to vector<8x1xf32>
    %95 = vector.broadcast %94 : vector<8x1xf32> to vector<8x4xf32>
    %96 = arith.mulf %95, %12 : vector<8x4xf32>
    %97 = arith.addf %93, %96 : vector<8x4xf32>
    %98 = vector.extract_strided_slice %83 {offsets = [0, 3], sizes = [8, 1], strides = [1, 1]} : vector<8x8xf32> to vector<8x1xf32>
    %99 = vector.broadcast %98 : vector<8x1xf32> to vector<8x4xf32>
    %100 = arith.mulf %99, %13 : vector<8x4xf32>
    %101 = arith.addf %97, %100 : vector<8x4xf32>
    %102 = vector.extract_strided_slice %83 {offsets = [0, 4], sizes = [8, 1], strides = [1, 1]} : vector<8x8xf32> to vector<8x1xf32>
    %103 = vector.broadcast %102 : vector<8x1xf32> to vector<8x4xf32>
    %104 = arith.mulf %103, %14 : vector<8x4xf32>
    %105 = arith.addf %101, %104 : vector<8x4xf32>
    %106 = vector.extract_strided_slice %83 {offsets = [0, 5], sizes = [8, 1], strides = [1, 1]} : vector<8x8xf32> to vector<8x1xf32>
    %107 = vector.broadcast %106 : vector<8x1xf32> to vector<8x4xf32>
    %108 = arith.mulf %107, %15 : vector<8x4xf32>
    %109 = arith.addf %105, %108 : vector<8x4xf32>
    %110 = vector.extract_strided_slice %83 {offsets = [0, 6], sizes = [8, 1], strides = [1, 1]} : vector<8x8xf32> to vector<8x1xf32>
    %111 = vector.broadcast %110 : vector<8x1xf32> to vector<8x4xf32>
    %112 = arith.mulf %111, %16 : vector<8x4xf32>
    %113 = arith.addf %109, %112 : vector<8x4xf32>
    %114 = vector.extract_strided_slice %83 {offsets = [0, 7], sizes = [8, 1], strides = [1, 1]} : vector<8x8xf32> to vector<8x1xf32>
    %115 = vector.broadcast %114 : vector<8x1xf32> to vector<8x4xf32>
    %116 = arith.mulf %115, %17 : vector<8x4xf32>
    %117 = arith.addf %113, %116 : vector<8x4xf32>
    %118 = tpu.concatenate %117, %86, %31 in 1 : vector<8x4xf32>, vector<8x4xf32>, vector<8x4xf32> -> vector<8x12xf32>
    %c0_3 = arith.constant 0 : index
    %c0_4 = arith.constant 0 : index
    %119 = vector.load %arg3[%c0_3, %c0_4] : memref<12x128xf32, #tpu.memory_space<vmem>>, vector<12x128xf32>
    %cst = arith.constant dense<0.000000e+00> : vector<8x128xf32>
    %120 = tpu.matmul %118, %119, %cst {dimension_numbers = #tpu.dot_dimension_numbers<[1], [0], [0], [1], [0, 0, 1, 1], [], []>} : vector<8x12xf32>, vector<12x128xf32>, vector<8x128xf32> -> vector<8x128xf32>
    %c0_5 = arith.constant 0 : index
    %c0_6 = arith.constant 0 : index
    %121 = vector.load %arg4[%c0_5, %c0_6] : memref<1x128xf32, #tpu.memory_space<vmem>>, vector<1x128xf32>
    %122 = vector.broadcast %121 : vector<1x128xf32> to vector<8x128xf32>
    %123 = arith.addf %120, %122 : vector<8x128xf32>
    %cst_7 = arith.constant 0.000000e+00 : f32
    %124 = vector.broadcast %cst_7 : f32 to vector<8x128xf32>
    %125 = arith.cmpf ogt, %123, %124 : vector<8x128xf32>
    %cst_8 = arith.constant 5.000000e-02 : f32
    %126 = vector.broadcast %cst_8 : f32 to vector<8x128xf32>
    %127 = arith.mulf %126, %123 : vector<8x128xf32>
    %128 = arith.select %125, %123, %127 : vector<8x128xi1>, vector<8x128xf32>
    %c0_9 = arith.constant 0 : index
    %c0_10 = arith.constant 0 : index
    %129 = vector.load %arg5[%c0_9, %c0_10] : memref<128x128xf32, #tpu.memory_space<vmem>>, vector<128x128xf32>
    %cst_11 = arith.constant dense<0.000000e+00> : vector<8x128xf32>
    %130 = tpu.matmul %128, %129, %cst_11 {dimension_numbers = #tpu.dot_dimension_numbers<[1], [0], [0], [1], [0, 0, 1, 1], [], []>} : vector<8x128xf32>, vector<128x128xf32>, vector<8x128xf32> -> vector<8x128xf32>
    %c0_12 = arith.constant 0 : index
    %c0_13 = arith.constant 0 : index
    %131 = vector.load %arg6[%c0_12, %c0_13] : memref<1x128xf32, #tpu.memory_space<vmem>>, vector<1x128xf32>
    %132 = vector.broadcast %131 : vector<1x128xf32> to vector<8x128xf32>
    %133 = arith.addf %130, %132 : vector<8x128xf32>
    %c0_14 = arith.constant 0 : index
    %c0_15 = arith.constant 0 : index
    %134 = vector.load %arg7[%c0_14, %c0_15] : memref<8x128xf32, #tpu.memory_space<vmem>>, vector<8x128xf32>
    tpu.vector_store %arg7[%c0_14, %c0_15], %133 {strides = array<i32>} : memref<8x128xf32, #tpu.memory_space<vmem>>, vector<8x128xf32>,
    return
  }
  func.func @transform_0(%arg0: i32) -> (i32, i32) {
    %c0_i32 = arith.constant 0 : i32
    %c0_i32_0 = arith.constant 0 : i32
    return %arg0, %c0_i32 : i32, i32
  }
  func.func @transform_1(%arg0: i32) -> (i32, i32) {
    %c0_i32 = arith.constant 0 : i32
    %c0_i32_0 = arith.constant 0 : i32
    return %arg0, %c0_i32 : i32, i32
  }
  func.func @transform_2(%arg0: i32) -> (i32, i32) {
    %c0_i32 = arith.constant 0 : i32
    %c0_i32_0 = arith.constant 0 : i32
    %c0_i32_1 = arith.constant 0 : i32
    return %c0_i32, %c0_i32_0 : i32, i32
  }
  func.func @transform_3(%arg0: i32) -> (i32, i32) {
    %c0_i32 = arith.constant 0 : i32
    %c0_i32_0 = arith.constant 0 : i32
    %c0_i32_1 = arith.constant 0 : i32
    return %c0_i32, %c0_i32_0 : i32, i32
  }
  func.func @transform_4(%arg0: i32) -> (i32, i32) {
    %c0_i32 = arith.constant 0 : i32
    %c0_i32_0 = arith.constant 0 : i32
    %c0_i32_1 = arith.constant 0 : i32
    return %c0_i32, %c0_i32_0 : i32, i32
  }
  func.func @transform_5(%arg0: i32) -> (i32, i32) {
    %c0_i32 = arith.constant 0 : i32
    %c0_i32_0 = arith.constant 0 : i32
    %c0_i32_1 = arith.constant 0 : i32
    return %c0_i32, %c0_i32_0 : i32, i32
  }
  func.func @transform_6(%arg0: i32) -> (i32, i32) {
    %c0_i32 = arith.constant 0 : i32
    %c0_i32_0 = arith.constant 0 : i32
    return %arg0, %c0_i32 : i32, i32
  }
}

</mosaic_0001>

<llo_original>
// kernel: network_encoder_forward.1
$region0: #{network_encoder_forward.1}
  #allocation0 [shape = 'u32[]', space=smem, size = 0x4, offset = 0x4, fixed_abs, tag = 'smem constant byte address 0x4 - core index']
  #allocation1 [shape = 'u32[72,128]{1,0:T(1,128)}', space=vmem, size = 0x9000, scoped, tag = 'internal scratch']
  %s0 = inlined_call_operand.vmem [shape: f32[13,32], index: 0, kind: input, shape index: {}]
  %s1 = inlined_call_operand.vmem [shape: f32[13,64], index: 1, kind: input, shape index: {}]
  %s2 = inlined_call_operand.vmem [shape: f32[12,128], index: 2, kind: input, shape index: {}]
  %s3 = inlined_call_operand.vmem [shape: f32[1,128], index: 3, kind: input, shape index: {}]
  %s4 = inlined_call_operand.vmem [shape: f32[128,128], index: 4, kind: input, shape index: {}]
  %s5 = inlined_call_operand.vmem [shape: f32[1,128], index: 5, kind: input, shape index: {}]
  %s6 = inlined_call_operand.hbm [shape: f32[13,128], index: 6, kind: output, shape index: {}]
  %s7 = sld [smem:[#allocation0]]
  $region57: #{network_encoder_forward.1} parent=0
    _
  %s9 = ssub.s32 1, %s7
  %s10 = scalar_select 0, %s9, %s7
  $region1: #{network_encoder_forward.1} parent=0
    #allocation2 [shape = 'u8[8192]{0}', space=vmem, size = 0x2000, scoped, tag = 'output window, operand 0']
    #allocation3 [shape = 's32[2]{0}', space=sflag, size = 0x8, scoped, tag = 'scoped memory for network_encoder_forward.1']
    %11 = vsyncpa [#allocation3], 0
    %s12 = scalar_lea.sflag [#allocation3], 1
    %13 = vsyncpa %s12, 0
    loop: start=0, step=1, limit=4
    $region2: #{network_encoder_forward.1} parent=1 // loop_pre_header
      _
    $region3: #{network_encoder_forward.1} parent=1 // loop_header
      %s15 = sphi 0, %s19
      %p16 = scmp.ge.s32.totalorder %s15, 4
      %s25 = sphi 0, %s27
      %s28 = sphi 0, %s25
      %s29 = sphi 0, %s28
      %s45 = sphi 0, %s29
      %s51 = sphi 0, %s53
      %s54 = sphi 0, %s51
      %s55 = sphi 0, %s54
      %s71 = sphi 0, %s55
      %s75 = sphi 0, %s75
      %s77 = sphi 0, %s75
      %s78 = sphi 0, %s77
      %s92 = sphi 0, %s78
      %s96 = sphi 0, %s96
      %s98 = sphi 0, %s96
      %s99 = sphi 0, %s98
      %s113 = sphi 0, %s99
      %s117 = sphi 0, %s117
      %s119 = sphi 0, %s117
      %s120 = sphi 0, %s119
      %s134 = sphi 0, %s120
      %s138 = sphi 0, %s138
      %s140 = sphi 0, %s138
      %s141 = sphi 0, %s140
      %s155 = sphi 0, %s141
      %s161 = sphi 0, %s163
      %s164 = sphi 0, %s161
      %s165 = sphi 0, %s164
      %s181 = sphi 0, %s165
    $region4: #{network_encoder_forward.1} parent=1 // loop_header_branch
      %18 = sbr.rel (%p16) target = $region8
    $region5: #{network_encoder_forward.1} parent=1 // loop_body
      %s20 = ssub.s32 %s15, 1
      %s21 = ssub.s32 %s15, 2
      %s22 = sadd.s32 %s15, 1
      %s23 = ssub.s32 %s15, %s22
      %p24 = scmp.eq.s32.totalorder %s23, 0
      %s26 = sadd.s32 %s25, 1
      %s27 = scalar_select %p24, %s25, %s26
      %p30 = pneg %p24
      %p31 = scmp.eq.s32.totalorder %s15, 1
      %p32 = por %p30, %p31
      %p33 = scmp.ne.s32.totalorder %s25, %s28
      %p34 = scmp.eq.s32.totalorder %s15, 0
      %p35 = por %p33, %p34
      %p36 = scmp.ne.s32.totalorder %s25, %s28
      %p37 = scmp.eq.s32.totalorder %s20, 1
      %p38 = por %p36, %p37
      %p39 = scmp.ne.s32.totalorder %s28, %s29
      %p40 = scmp.eq.s32.totalorder %s20, 0
      %p41 = por %p39, %p40
      %p42 = scmp.ne.s32.totalorder %s28, %s29
      %p43 = scmp.eq.s32.totalorder %s21, 1
      %p44 = por %p42, %p43
      %p46 = scmp.ne.s32.totalorder %s29, %s45
      %p47 = scmp.eq.s32.totalorder %s21, 0
      %p48 = por %p46, %p47
      %s49 = ssub.s32 %s15, %s22
      %p50 = scmp.eq.s32.totalorder %s49, 0
      %s52 = sadd.s32 %s51, 1
      %s53 = scalar_select %p50, %s51, %s52
      %p56 = pneg %p50
      %p57 = scmp.eq.s32.totalorder %s15, 1
      %p58 = por %p56, %p57
      %p59 = scmp.ne.s32.totalorder %s51, %s54
      %p60 = scmp.eq.s32.totalorder %s15, 0
      %p61 = por %p59, %p60
      %p62 = scmp.ne.s32.totalorder %s51, %s54
      %p63 = scmp.eq.s32.totalorder %s20, 1
      %p64 = por %p62, %p63
      %p65 = scmp.ne.s32.totalorder %s54, %s55
      %p66 = scmp.eq.s32.totalorder %s20, 0
      %p67 = por %p65, %p66
      %p68 = scmp.ne.s32.totalorder %s54, %s55
      %p69 = scmp.eq.s32.totalorder %s21, 1
      %p70 = por %p68, %p69
      %p72 = scmp.ne.s32.totalorder %s55, %s71
      %p73 = scmp.eq.s32.totalorder %s21, 0
      %p74 = por %p72, %p73
      %s76 = sadd.s32 %s75, 1
      %p79 = scmp.eq.s32.totalorder %s15, 1
      %p80 = scmp.ne.s32.totalorder %s75, %s77
      %p81 = scmp.eq.s32.totalorder %s15, 0
      %p82 = por %p80, %p81
      %p83 = scmp.ne.s32.totalorder %s75, %s77
      %p84 = scmp.eq.s32.totalorder %s20, 1
      %p85 = por %p83, %p84
      %p86 = scmp.ne.s32.totalorder %s77, %s78
      %p87 = scmp.eq.s32.totalorder %s20, 0
      %p88 = por %p86, %p87
      %p89 = scmp.ne.s32.totalorder %s77, %s78
      %p90 = scmp.eq.s32.totalorder %s21, 1
      %p91 = por %p89, %p90
      %p93 = scmp.ne.s32.totalorder %s78, %s92
      %p94 = scmp.eq.s32.totalorder %s21, 0
      %p95 = por %p93, %p94
      %s97 = sadd.s32 %s96, 1
      %p100 = scmp.eq.s32.totalorder %s15, 1
      %p101 = scmp.ne.s32.totalorder %s96, %s98
      %p102 = scmp.eq.s32.totalorder %s15, 0
      %p103 = por %p101, %p102
      %p104 = scmp.ne.s32.totalorder %s96, %s98
      %p105 = scmp.eq.s32.totalorder %s20, 1
      %p106 = por %p104, %p105
      %p107 = scmp.ne.s32.totalorder %s98, %s99
      %p108 = scmp.eq.s32.totalorder %s20, 0
      %p109 = por %p107, %p108
      %p110 = scmp.ne.s32.totalorder %s98, %s99
      %p111 = scmp.eq.s32.totalorder %s21, 1
      %p112 = por %p110, %p111
      %p114 = scmp.ne.s32.totalorder %s99, %s113
      %p115 = scmp.eq.s32.totalorder %s21, 0
      %p116 = por %p114, %p115
      %s118 = sadd.s32 %s117, 1
      %p121 = scmp.eq.s32.totalorder %s15, 1
      %p122 = scmp.ne.s32.totalorder %s117, %s119
      %p123 = scmp.eq.s32.totalorder %s15, 0
      %p124 = por %p122, %p123
      %p125 = scmp.ne.s32.totalorder %s117, %s119
      %p126 = scmp.eq.s32.totalorder %s20, 1
      %p127 = por %p125, %p126
      %p128 = scmp.ne.s32.totalorder %s119, %s120
      %p129 = scmp.eq.s32.totalorder %s20, 0
      %p130 = por %p128, %p129
      %p131 = scmp.ne.s32.totalorder %s119, %s120
      %p132 = scmp.eq.s32.totalorder %s21, 1
      %p133 = por %p131, %p132
      %p135 = scmp.ne.s32.totalorder %s120, %s134
      %p136 = scmp.eq.s32.totalorder %s21, 0
      %p137 = por %p135, %p136
      %s139 = sadd.s32 %s138, 1
      %p142 = scmp.eq.s32.totalorder %s15, 1
      %p143 = scmp.ne.s32.totalorder %s138, %s140
      %p144 = scmp.eq.s32.totalorder %s15, 0
      %p145 = por %p143, %p144
      %p146 = scmp.ne.s32.totalorder %s138, %s140
      %p147 = scmp.eq.s32.totalorder %s20, 1
      %p148 = por %p146, %p147
      %p149 = scmp.ne.s32.totalorder %s140, %s141
      %p150 = scmp.eq.s32.totalorder %s20, 0
      %p151 = por %p149, %p150
      %p152 = scmp.ne.s32.totalorder %s140, %s141
      %p153 = scmp.eq.s32.totalorder %s21, 1
      %p154 = por %p152, %p153
      %p156 = scmp.ne.s32.totalorder %s141, %s155
      %p157 = scmp.eq.s32.totalorder %s21, 0
      %p158 = por %p156, %p157
      %s159 = ssub.s32 %s15, %s22
      %p160 = scmp.eq.s32.totalorder %s159, 0
      %s162 = sadd.s32 %s161, 1
      %s163 = scalar_select %p160, %s161, %s162
      %p166 = pneg %p160
      %p167 = scmp.eq.s32.totalorder %s15, 1
      %p168 = por %p166, %p167
      %p169 = scmp.ne.s32.totalorder %s161, %s164
      %p170 = scmp.eq.s32.totalorder %s15, 0
      %p171 = por %p169, %p170
      %p172 = scmp.ne.s32.totalorder %s161, %s164
      %p173 = scmp.eq.s32.totalorder %s20, 1
      %p174 = por %p172, %p173
      %p175 = scmp.ne.s32.totalorder %s164, %s165
      %p176 = scmp.eq.s32.totalorder %s20, 0
      %p177 = por %p175, %p176
      %p178 = scmp.ne.s32.totalorder %s164, %s165
      %p179 = scmp.eq.s32.totalorder %s21, 1
      %p180 = por %p178, %p179
      %p182 = scmp.ne.s32.totalorder %s165, %s181
      %p183 = scmp.eq.s32.totalorder %s21, 0
      %p184 = por %p182, %p183
      %p185 = scmp.le.s32.totalorder 1, %s15
      %p186 = scmp.lt.s32.totalorder %s15, 3
      %p187 = pnand %p185, %p186
      %p188 = pneg %p187
      // Predicated region
      $region9: #{network_encoder_forward.1} parent=5 // pred_check
        _
      $region10: #{network_encoder_forward.1} parent=5 // pred_check_branch
        %190 = sbr.rel (%p187) target = $region12
      $region11: #{network_encoder_forward.1} parent=5 // pred_region
        %s191 = ssub.s32 %s15, 1
        // Predicated region
        $region13: #{network_encoder_forward.1} parent=11 // pred_check
          %p192 = pneg %p88
        $region14: #{network_encoder_forward.1} parent=11 // pred_check_branch
          %194 = sbr.rel (%p192) target = $region16
        $region15: #{network_encoder_forward.1} parent=11 // pred_region
          _
        $region16: #{network_encoder_forward.1} parent=11 // pred_fallthru
          _
        // Predicated region
        $region17: #{network_encoder_forward.1} parent=11 // pred_check
          %p195 = pneg %p109
        $region18: #{network_encoder_forward.1} parent=11 // pred_check_branch
          %197 = sbr.rel (%p195) target = $region20
        $region19: #{network_encoder_forward.1} parent=11 // pred_region
          _
        $region20: #{network_encoder_forward.1} parent=11 // pred_fallthru
          _
        // Predicated region
        $region21: #{network_encoder_forward.1} parent=11 // pred_check
          %p198 = pneg %p130
        $region22: #{network_encoder_forward.1} parent=11 // pred_check_branch
          %200 = sbr.rel (%p198) target = $region24
        $region23: #{network_encoder_forward.1} parent=11 // pred_region
          _
        $region24: #{network_encoder_forward.1} parent=11 // pred_fallthru
          _
        // Predicated region
        $region25: #{network_encoder_forward.1} parent=11 // pred_check
          %p201 = pneg %p151
        $region26: #{network_encoder_forward.1} parent=11 // pred_check_branch
          %203 = sbr.rel (%p201) target = $region28
        $region27: #{network_encoder_forward.1} parent=11 // pred_region
          _
        $region28: #{network_encoder_forward.1} parent=11 // pred_fallthru
          _
      $region12: #{network_encoder_forward.1} parent=5 // pred_fallthru
        _
      %p204 = scmp.lt.s32.totalorder %s15, 2
      // Predicated region
      $region29: #{network_encoder_forward.1} parent=5 // pred_check
        %p205 = pneg %p204
      $region30: #{network_encoder_forward.1} parent=5 // pred_check_branch
        %207 = sbr.rel (%p205) target = $region32
      $region31: #{network_encoder_forward.1} parent=5 // pred_region
        // Predicated region
        $region33: #{network_encoder_forward.1} parent=31 // pred_check
          %p208 = pneg %p35
        $region34: #{network_encoder_forward.1} parent=31 // pred_check_branch
          %210 = sbr.rel (%p208) target = $region36
        $region35: #{network_encoder_forward.1} parent=31 // pred_region
          %p211 = scmp.lt.s32.totalorder %s15, 1
          %s212 = scalar_select %p211, %s15, 1
          %s213 = smul.addr %s212, 8
          %s214 = scalar_lea.vmem %s0, %s213
        $region36: #{network_encoder_forward.1} parent=31 // pred_fallthru
          _
        // Predicated region
        $region37: #{network_encoder_forward.1} parent=31 // pred_check
          %p215 = pneg %p61
        $region38: #{network_encoder_forward.1} parent=31 // pred_check_branch
          %217 = sbr.rel (%p215) target = $region40
        $region39: #{network_encoder_forward.1} parent=31 // pred_region
          %p218 = scmp.lt.s32.totalorder %s15, 1
          %s219 = scalar_select %p218, %s15, 1
          %s220 = smul.addr %s219, 8
          %s221 = scalar_lea.vmem %s1, %s220
        $region40: #{network_encoder_forward.1} parent=31 // pred_fallthru
          _
      $region32: #{network_encoder_forward.1} parent=5 // pred_fallthru
        _
      %p222 = scmp.le.s32.totalorder 1, %s15
      %p223 = scmp.lt.s32.totalorder %s15, 3
      %p224 = pnand %p222, %p223
      %p225 = pneg %p224
      // Predicated region
      $region41: #{network_encoder_forward.1} parent=5 // pred_check
        _
      $region42: #{network_encoder_forward.1} parent=5 // pred_check_branch
        %227 = sbr.rel (%p224) target = $region44
      $region43: #{network_encoder_forward.1} parent=5 // pred_region
        %s228 = ssub.s32 %s15, 1
        %p229 = scmp.lt.s32.totalorder %s20, 1
        %s230 = scalar_select %p229, %s20, 1
        %s231 = smul.addr %s230, 8
        %s232 = scalar_lea.vmem %s0, %s231
        %p233 = pneg %p41
        %p234 = pneg %p38
        %p235 = scmp.lt.s32.totalorder %s20, 1
        %s236 = scalar_select %p235, %s20, 1
        %s237 = smul.addr %s236, 8
        %s238 = scalar_lea.vmem %s1, %s237
        %p239 = pneg %p67
        %p240 = pneg %p64
        %p241 = pneg %p88
        %p242 = pneg %p85
        %p243 = pneg %p109
        %p244 = pneg %p106
        %p245 = pneg %p130
        %p246 = pneg %p127
        %p247 = pneg %p151
        %p248 = pneg %p148
        %p249 = pneg %p177
        %p250 = pneg %p174
        %s251 = sand.u32 %s164, 1
        %s252 = scalar_lea.sflag [#allocation3], %s251
        %s253 = sand.u32 %s164, 1
        %s254 = smul.addr %s253, 8
        %s255 = scalar_lea.vmem [#allocation2], %s254
        %p256 = scmp.lt.s32.totalorder %s20, 1
        %s257 = scalar_select %p256, %s20, 1
        %s258 = smul.addr %s257, 8
        %s259 = scalar_lea.vmem %s0, %s258
        %p260 = scmp.lt.s32.totalorder %s20, 1
        %s261 = scalar_select %p260, %s20, 1
        %s262 = smul.addr %s261, 8
        %s263 = scalar_lea.vmem %s1, %s262
        %v264 = vld [vmem:[%s259] sm:$0xff]
        %v265 = vld [vmem:[%s263] sm:$0xff]
        %267 = vrot.lane.b32.xlu0 %v265, 120
        %v268 = vpop.permute.xlu0 %267
        %v270 = vadd.f32 %v265, %v268
        %271 = vrot.lane.b32.xlu0 %v265, 112
        %v272 = vpop.permute.xlu0 %271
        %v274 = vadd.f32 %v270, %v272
        %275 = vrot.lane.b32.xlu0 %v265, 104
        %v276 = vpop.permute.xlu0 %275
        %v278 = vadd.f32 %v274, %v276
        %279 = vrot.lane.b32.xlu0 %v265, 96
        %v280 = vpop.permute.xlu0 %279
        %v282 = vadd.f32 %v278, %v280
        %283 = vrot.lane.b32.xlu0 %v265, 88
        %v284 = vpop.permute.xlu0 %283
        %v286 = vadd.f32 %v282, %v284
        %287 = vrot.lane.b32.xlu0 %v265, 80
        %v288 = vpop.permute.xlu0 %287
        %v290 = vadd.f32 %v286, %v288
        %291 = vrot.lane.b32.xlu0 %v265, 72
        %v292 = vpop.permute.xlu0 %291
        %v294 = vadd.f32 %v290, %v292
        %296 = vrot.lane.b32.xlu0 %v264, 124
        %v297 = vpop.permute.xlu0 %296
        %v299 = vadd.f32 %v264, %v297
        %300 = vrot.lane.b32.xlu0 %v264, 120
        %v301 = vpop.permute.xlu0 %300
        %v303 = vadd.f32 %v299, %v301
        %304 = vrot.lane.b32.xlu0 %v264, 116
        %v305 = vpop.permute.xlu0 %304
        %v307 = vadd.f32 %v303, %v305
        %308 = vrot.lane.b32.xlu0 %v264, 112
        %v309 = vpop.permute.xlu0 %308
        %v311 = vadd.f32 %v307, %v309
        %312 = vrot.lane.b32.xlu0 %v264, 108
        %v313 = vpop.permute.xlu0 %312
        %v315 = vadd.f32 %v311, %v313
        %316 = vrot.lane.b32.xlu0 %v264, 104
        %v317 = vpop.permute.xlu0 %316
        %v319 = vadd.f32 %v315, %v317
        %320 = vrot.lane.b32.xlu0 %v264, 100
        %v321 = vpop.permute.xlu0 %320
        %v323 = vadd.f32 %v319, %v321
        %325 = vset.pattern.permute.xlu0 0
        %326 = vperm.xlu0 %325, %v294
        %v327 = vpop.permute.xlu0 %326
        %v329 = vmul.f32 %v327, %v265
        %v330 = vmul.f32 %v327, %v264
        %331 = vset.pattern.permute.xlu0 1
        %332 = vperm.xlu0 %331, %v294
        %v333 = vpop.permute.xlu0 %332
        %v335 = vmul.f32 %v333, %v265
        %337 = vrot.lane.b32.xlu0 %v335, 120
        %v338 = vpop.permute.xlu0 %337
        %v340 = vadd.f32 %v329, %v338
        %v341 = vmul.f32 %v333, %v264
        %343 = vrot.lane.b32.xlu0 %v341, 124
        %v344 = vpop.permute.xlu0 %343
        %v346 = vadd.f32 %v330, %v344
        %347 = vset.pattern.permute.xlu0 2
        %348 = vperm.xlu0 %347, %v294
        %v349 = vpop.permute.xlu0 %348
        %v351 = vmul.f32 %v349, %v265
        %353 = vrot.lane.b32.xlu0 %v351, 112
        %v354 = vpop.permute.xlu0 %353
        %v356 = vadd.f32 %v340, %v354
        %v357 = vmul.f32 %v349, %v264
        %359 = vrot.lane.b32.xlu0 %v357, 120
        %v360 = vpop.permute.xlu0 %359
        %v362 = vadd.f32 %v346, %v360
        %363 = vset.pattern.permute.xlu0 3
        %364 = vperm.xlu0 %363, %v294
        %v365 = vpop.permute.xlu0 %364
        %v367 = vmul.f32 %v365, %v265
        %369 = vrot.lane.b32.xlu0 %v367, 104
        %v370 = vpop.permute.xlu0 %369
        %v372 = vadd.f32 %v356, %v370
        %v373 = vmul.f32 %v365, %v264
        %375 = vrot.lane.b32.xlu0 %v373, 116
        %v376 = vpop.permute.xlu0 %375
        %v378 = vadd.f32 %v362, %v376
        %379 = vset.pattern.permute.xlu0 4
        %380 = vperm.xlu0 %379, %v294
        %v381 = vpop.permute.xlu0 %380
        %v383 = vmul.f32 %v381, %v265
        %385 = vrot.lane.b32.xlu0 %v383, 96
        %v386 = vpop.permute.xlu0 %385
        %v388 = vadd.f32 %v372, %v386
        %v389 = vmul.f32 %v381, %v264
        %391 = vrot.lane.b32.xlu0 %v389, 112
        %v392 = vpop.permute.xlu0 %391
        %v394 = vadd.f32 %v378, %v392
        %395 = vset.pattern.permute.xlu0 5
        %396 = vperm.xlu0 %395, %v294
        %v397 = vpop.permute.xlu0 %396
        %v399 = vmul.f32 %v397, %v265
        %401 = vrot.lane.b32.xlu0 %v399, 88
        %v402 = vpop.permute.xlu0 %401
        %v404 = vadd.f32 %v388, %v402
        %v405 = vmul.f32 %v397, %v264
        %407 = vrot.lane.b32.xlu0 %v405, 108
        %v408 = vpop.permute.xlu0 %407
        %v410 = vadd.f32 %v394, %v408
        %411 = vset.pattern.permute.xlu0 6
        %412 = vperm.xlu0 %411, %v294
        %v413 = vpop.permute.xlu0 %412
        %v415 = vmul.f32 %v413, %v265
        %417 = vrot.lane.b32.xlu0 %v415, 80
        %v418 = vpop.permute.xlu0 %417
        %v420 = vadd.f32 %v404, %v418
        %v421 = vmul.f32 %v413, %v264
        %423 = vrot.lane.b32.xlu0 %v421, 104
        %v424 = vpop.permute.xlu0 %423
        %v426 = vadd.f32 %v410, %v424
        %427 = vset.pattern.permute.xlu0 7
        %428 = vperm.xlu0 %427, %v294
        %v429 = vpop.permute.xlu0 %428
        %v431 = vmul.f32 %v429, %v265
        %433 = vrot.lane.b32.xlu0 %v431, 72
        %v434 = vpop.permute.xlu0 %433
        %v436 = vadd.f32 %v420, %v434
        %v437 = vmul.f32 %v429, %v264
        %439 = vrot.lane.b32.xlu0 %v437, 100
        %v440 = vpop.permute.xlu0 %439
        %v442 = vadd.f32 %v426, %v440
        %444 = vset.pattern.permute.xlu0 0
        %445 = vperm.xlu0 %444, %v436
        %v446 = vpop.permute.xlu0 %445
        %v448 = vmul.f32 %v446, %v264
        %449 = vset.pattern.permute.xlu0 1
        %450 = vperm.xlu0 %449, %v436
        %v451 = vpop.permute.xlu0 %450
        %v453 = vmul.f32 %v451, %v264
        %455 = vrot.lane.b32.xlu0 %v453, 124
        %v456 = vpop.permute.xlu0 %455
        %v458 = vadd.f32 %v448, %v456
        %459 = vset.pattern.permute.xlu0 2
        %460 = vperm.xlu0 %459, %v436
        %v461 = vpop.permute.xlu0 %460
        %v463 = vmul.f32 %v461, %v264
        %465 = vrot.lane.b32.xlu0 %v463, 120
        %v466 = vpop.permute.xlu0 %465
        %v468 = vadd.f32 %v458, %v466
        %469 = vset.pattern.permute.xlu0 3
        %470 = vperm.xlu0 %469, %v436
        %v471 = vpop.permute.xlu0 %470
        %v473 = vmul.f32 %v471, %v264
        %475 = vrot.lane.b32.xlu0 %v473, 116
        %v476 = vpop.permute.xlu0 %475
        %v478 = vadd.f32 %v468, %v476
        %479 = vset.pattern.permute.xlu0 4
        %480 = vperm.xlu0 %479, %v436
        %v481 = vpop.permute.xlu0 %480
        %v483 = vmul.f32 %v481, %v264
        %485 = vrot.lane.b32.xlu0 %v483, 112
        %v486 = vpop.permute.xlu0 %485
        %v488 = vadd.f32 %v478, %v486
        %489 = vset.pattern.permute.xlu0 5
        %490 = vperm.xlu0 %489, %v436
        %v491 = vpop.permute.xlu0 %490
        %v493 = vmul.f32 %v491, %v264
        %495 = vrot.lane.b32.xlu0 %v493, 108
        %v496 = vpop.permute.xlu0 %495
        %v498 = vadd.f32 %v488, %v496
        %499 = vset.pattern.permute.xlu0 6
        %500 = vperm.xlu0 %499, %v436
        %v501 = vpop.permute.xlu0 %500
        %v503 = vmul.f32 %v501, %v264
        %505 = vrot.lane.b32.xlu0 %v503, 104
        %v506 = vpop.permute.xlu0 %505
        %v508 = vadd.f32 %v498, %v506
        %509 = vset.pattern.permute.xlu0 7
        %510 = vperm.xlu0 %509, %v436
        %v511 = vpop.permute.xlu0 %510
        %v513 = vmul.f32 %v511, %v264
        %515 = vrot.lane.b32.xlu0 %v513, 100
        %v516 = vpop.permute.xlu0 %515
        %v518 = vadd.f32 %v508, %v516
        %520 = vrot.lane.b32.xlu0 %v442, 4
        %v521 = vpop.permute.xlu0 %520
        %524 = vrot.lane.b32.xlu0 %v323, 8
        %v525 = vpop.permute.xlu0 %524
        %vm527 = vcmask 31744
        %v528 = vsel %vm527, %v518, %v521
        %vm529 = vcmask 64512
        %v530 = vsel %vm529, %v528, %v525
        %v531 = vld [vmem:[%s2] sm:$0xff]
        %v532 = vld [vmem:[%s2 + $0x8] sm:$0xf]
        %v533 = vld [vmem:[%s3] sm:$0x1]
        %v535 = vperm.slane %v533, 0
        %vm537 = vcmask 97280
        %v539 = vsel %vm537, %v530, 0
        %vm541 = vcmask 1043456
        %v543 = vsel %vm541, %v532, 0
        %545 = vmatpush.msra.mxu0 0.0
        %546 = vmatpush.msra.mxu0 0.0
        %547 = vmatpush.msra.mxu0 0.0
        %548 = vmatpush.msra.mxu0 0.0
        %549 = vmatpush.msra.mxu0 0.0
        %550 = vmatpush.msra.mxu0 0.0
        %551 = vmatpush.msra.mxu0 0.0
        %552 = vmatpush.msra.mxu0 0.0
        %553 = vmatpush.msra.mxu0 0.0
        %554 = vmatpush.msra.mxu0 0.0
        %555 = vmatpush.msra.mxu0 0.0
        %556 = vmatpush.msra.mxu0 0.0
        %557 = vmatpush.msra.mxu0 0.0
        %558 = vmatpush.msra.mxu0 0.0
        %559 = vmatpush.msra.mxu0 %v543
        %560 = vmatpush.msra.mxu0 %v531
        %561 = vmatmul.f32.gmra.mxu0 %v539
        %v562 = vpop.f32.mrf.mxu0
        %v563 = vadd.f32 %v535, %v562
        %564 = vdwg.mxu0
        %vm565 = vcmp.gt.f32.partialorder %v563, 0.0
        %v566 = vmul.f32 %v563, 0.05
        %v567 = vsel %vm565, %v563, %v566
        %v568 = vld [vmem:[%s4] sm:$0xff]
        %v569 = vld [vmem:[%s4 + $0x8] sm:$0xff]
        %v570 = vld [vmem:[%s4 + $0x10] sm:$0xff]
        %v571 = vld [vmem:[%s4 + $0x18] sm:$0xff]
        %v572 = vld [vmem:[%s4 + $0x20] sm:$0xff]
        %v573 = vld [vmem:[%s4 + $0x28] sm:$0xff]
        %v574 = vld [vmem:[%s4 + $0x30] sm:$0xff]
        %v575 = vld [vmem:[%s4 + $0x38] sm:$0xff]
        %v576 = vld [vmem:[%s4 + $0x40] sm:$0xff]
        %v577 = vld [vmem:[%s4 + $0x48] sm:$0xff]
        %v578 = vld [vmem:[%s4 + $0x50] sm:$0xff]
        %v579 = vld [vmem:[%s4 + $0x58] sm:$0xff]
        %v580 = vld [vmem:[%s4 + $0x60] sm:$0xff]
        %v581 = vld [vmem:[%s4 + $0x68] sm:$0xff]
        %v582 = vld [vmem:[%s4 + $0x70] sm:$0xff]
        %v583 = vld [vmem:[%s4 + $0x78] sm:$0xff]
        %v584 = vld [vmem:[%s5] sm:$0x1]
        %v586 = vperm.slane %v584, 0
        %588 = vmatpush.msra.mxu0 %v583
        %589 = vmatpush.msra.mxu0 %v582
        %590 = vmatpush.msra.mxu0 %v581
        %591 = vmatpush.msra.mxu0 %v580
        %592 = vmatpush.msra.mxu0 %v579
        %593 = vmatpush.msra.mxu0 %v578
        %594 = vmatpush.msra.mxu0 %v577
        %595 = vmatpush.msra.mxu0 %v576
        %596 = vmatpush.msra.mxu0 %v575
        %597 = vmatpush.msra.mxu0 %v574
        %598 = vmatpush.msra.mxu0 %v573
        %599 = vmatpush.msra.mxu0 %v572
        %600 = vmatpush.msra.mxu0 %v571
        %601 = vmatpush.msra.mxu0 %v570
        %602 = vmatpush.msra.mxu0 %v569
        %603 = vmatpush.msra.mxu0 %v568
        %604 = vmatmul.f32.gmra.mxu0 %v567
        %v605 = vpop.f32.mrf.mxu0
        %v606 = vadd.f32 %v586, %v605
        %607 = vdwg.mxu0
        %608 = vst [vmem:[%s255] sm:$0xff] %v606
        %s609 = sand.u32 %s164, 1
        %s610 = scalar_lea.sflag [#allocation3], %s609
        %s611 = sand.u32 %s164, 1
        %s612 = smul.addr %s611, 8
        %s613 = scalar_lea.vmem [#allocation2], %s612
        // Predicated region
        $region45: #{network_encoder_forward.1} parent=43 // pred_check
          %p614 = pneg %p174
        $region46: #{network_encoder_forward.1} parent=43 // pred_check_branch
          %616 = sbr.rel (%p614) target = $region48
        $region47: #{network_encoder_forward.1} parent=43 // pred_region
          %618 = vsyncadd %s610, 0
          %s619 = smul.addr %s20, 8
          %s620 = scalar_lea.hbm %s6, %s619
          %s622 = sshll.u32 %s613, 4
          %s623 = int_to_ptr.vmem [resolvable:$true] %s622
          %s624 = sshll.u32 %s620, 4
          %s625 = int_to_ptr.hbm [resolvable:$true] %s624
          %627 = dma.vmem_to_hbm [thread:$0]  %s623, 128, %s625, %s610
        $region48: #{network_encoder_forward.1} parent=43 // pred_fallthru
          _
      $region44: #{network_encoder_forward.1} parent=5 // pred_fallthru
        _
      %p628 = scmp.le.s32.totalorder 2, %s15
      // Predicated region
      $region49: #{network_encoder_forward.1} parent=5 // pred_check
        %p629 = pneg %p628
      $region50: #{network_encoder_forward.1} parent=5 // pred_check_branch
        %631 = sbr.rel (%p629) target = $region52
      $region51: #{network_encoder_forward.1} parent=5 // pred_region
        %s632 = ssub.s32 %s15, 2
        // Predicated region
        $region53: #{network_encoder_forward.1} parent=51 // pred_check
          %p633 = pneg %p180
        $region54: #{network_encoder_forward.1} parent=51 // pred_check_branch
          %635 = sbr.rel (%p633) target = $region56
        $region55: #{network_encoder_forward.1} parent=51 // pred_region
          %s636 = sand.u32 %s165, 1
          %s637 = scalar_lea.sflag [#allocation3], %s636
          %s638 = sand.u32 %s165, 1
          %s639 = smul.addr %s638, 8
          %s640 = scalar_lea.vmem [#allocation2], %s639
          %642 = dma.done %s637, 128
        $region56: #{network_encoder_forward.1} parent=51 // pred_fallthru
          _
      $region52: #{network_encoder_forward.1} parent=5 // pred_fallthru
        _
    $region6: #{network_encoder_forward.1} parent=1 // loop_footer
      %s19 = sadd.s32 1, %s15
    $region7: #{network_encoder_forward.1} parent=1 // loop_footer_branch
      %14 = sbr.rel target = $region3
    $region8: #{network_encoder_forward.1} parent=1 // loop_exit
      _
    %643 = vsyncpa [#allocation3], 1
    %s644 = scalar_lea.sflag [#allocation3], 1
    %645 = vsyncpa %s644, 1

</llo_original>
